<compile_context>
chip_gen: v5e
topology: v5e:2x2
jax: 0.10.0
libtpu: 0.0.40
codegen_flags: <defaults>
</compile_context>

<pallas_src>
import jax
import jax.numpy as jnp
from jax import lax
from jax.experimental import pallas as pl
from jax.experimental.pallas import tpu as pltpu


_LANE = 128
_VMEM_BUDGET = 40 * 1024 * 1024       # stay well under v7x's 64 MiB physical VMEM
_SMALL_PROBLEM_FLOPS = 2 * (1 << 18)  # below this, plain XLA is strictly faster


def _round_up(x, m):
    return (x + m - 1) // m * m


def _sublane(dtype):
    # Second-minor tiling: 8 rows for 4-byte, 16 for 2-byte, 32 for 1-byte dtypes.
    return max(8, 32 // jnp.dtype(dtype).itemsize)


def _pick_tile(dim, step, target):
    """Largest tile (multiple of `step`, <= target) with small padding waste."""
    dim = _round_up(dim, step)
    if dim <= target:
        return dim
    best = step
    for t in range(step, target + 1, step):
        if _round_up(dim, t) - dim <= dim // 8:
            best = t
    return best


def _linear_block_kernel(x_ref, w_ref, b_ref, o_ref, acc_ref):
    # x tile (tm, tk) contracted with w tile (tn, tk) on the minor dim -> (tm, tn).
    partial = lax.dot_general(
        x_ref[...],
        w_ref[...],
        dimension_numbers=(((1,), (1,)), ((), ())),
        preferred_element_type=jnp.float32,
    )

    @pl.when(pl.program_id(2) == 0)
    def _():
        acc_ref[...] = partial          # first K step: write, don't zero+add

    @pl.when(pl.program_id(2) > 0)
    def _():
        acc_ref[...] += partial

    @pl.when(pl.program_id(2) == pl.num_programs(2) - 1)
    def _():
        y = acc_ref[...] + b_ref[...].astype(jnp.float32)
        o_ref[...] = jnp.maximum(y, 0.0).astype(o_ref.dtype)


def linear_block(x, weight, bias, *, target_tile=512, compute_dtype=None,
                 force_pallas=False):
    """out = relu(x @ weight.T + bias); weight is (output_dim, input_dim)."""
    M, K = x.shape
    N, K2 = weight.shape
    assert K == K2, "weight must be (output_dim, input_dim)"
    assert bias.shape == (N,)
    out_dtype = x.dtype

    # Small-problem fast path: at e.g. M=8 the MXU is <4% utilized and
    # pallas_call/grid overhead dominates; plain XLA wins.
    if not force_pallas and 2 * M * N * K < _SMALL_PROBLEM_FLOPS:
        y = jnp.dot(x, weight.T, preferred_element_type=jnp.float32)
        return jnp.maximum(y + bias.astype(jnp.float32), 0.0).astype(out_dtype)

    if compute_dtype is not None:
        # Optional reduced-precision operand path (e.g. bf16): MXU-native on
        # v5e/v6e/v7x and halves HBM traffic; accumulation/bias remain f32.
        x = x.astype(compute_dtype)
        weight = weight.astype(compute_dtype)

    sub_row = max(_sublane(x.dtype), _sublane(out_dtype))

    m_align = _round_up(M, sub_row)
    n_align = _round_up(N, _LANE)
    k_align = _round_up(K, _LANE)

    tm = _pick_tile(m_align, sub_row, target_tile)
    tn = _pick_tile(n_align, _LANE, target_tile)
    tk = _pick_tile(k_align, _LANE, target_tile)

    # Megacore (v7x has 2 TensorCores): ensure >= 2 parallel blocks when possible.
    if pl.cdiv(m_align, tm) * pl.cdiv(n_align, tn) < 2:
        if n_align >= 2 * _LANE:
            tn = max(_LANE, (n_align // 2) // _LANE * _LANE)
        elif m_align >= 2 * sub_row:
            tm = max(sub_row, (m_align // 2) // sub_row * sub_row)

    x_item = jnp.dtype(x.dtype).itemsize
    w_item = jnp.dtype(weight.dtype).itemsize
    b_item = jnp.dtype(bias.dtype).itemsize
    o_item = jnp.dtype(out_dtype).itemsize

    def vmem_bytes(tm_, tn_, tk_):
        return (2 * tm_ * tk_ * x_item      # x double buffer
                + 2 * tn_ * tk_ * w_item    # weight double buffer
                + 2 * tn_ * b_item          # bias double buffer
                + 2 * tm_ * tn_ * o_item    # output double buffer
                + tm_ * tn_ * 4)            # f32 accumulator scratch

    # Keep the footprint inside the (v7x-safe) budget: shrink tk, then tn.
    while vmem_bytes(tm, tn, tk) > _VMEM_BUDGET and tk > _LANE:
        tk = max(_LANE, (tk // 2) // _LANE * _LANE)
    while vmem_bytes(tm, tn, tk) > _VMEM_BUDGET and tn > _LANE:
        tn = max(_LANE, (tn // 2) // _LANE * _LANE)

    Mp = _round_up(m_align, tm)
    Np = _round_up(n_align, tn)
    Kp = _round_up(k_align, tk)

    # Alignment pads (zero padding is exact for matmul+bias+ReLU given the
    # final slice); allow_input_fusion lets XLA fuse them into the call.
    xp = x if (Mp == M and Kp == K) else jnp.pad(x, ((0, Mp - M), (0, Kp - K)))
    wp = (weight if (Np == N and Kp == K)
          else jnp.pad(weight, ((0, Np - N), (0, Kp - K))))
    bp = (bias if Np == N else jnp.pad(bias, (0, Np - N))).reshape(1, Np)

    grid = (Mp // tm, Np // tn, Kp // tk)

    cost = pl.CostEstimate(
        flops=2 * Mp * Np * Kp,
        transcendentals=0,
        bytes_accessed=(Mp * Kp * x_item * grid[1]     # x re-streamed per j block
                        + Np * Kp * w_item * grid[0]   # w re-streamed per i block
                        + Np * b_item
                        + Mp * Np * o_item),
    )

    vmem_limit = int(min(max(2 * vmem_bytes(tm, tn, tk), 32 * 1024 * 1024),
                         48 * 1024 * 1024))

    out = pl.pallas_call(
        _linear_block_kernel,
        out_shape=jax.ShapeDtypeStruct((Mp, Np), out_dtype),
        grid=grid,
        in_specs=[
            # x tile (tm, tk): walks K with k.
            pl.BlockSpec((tm, tk), lambda i, j, k: (i, k)),
            # weight tile (tn, tk) in nn.Linear layout: walks K with k.
            pl.BlockSpec((tn, tk), lambda i, j, k: (j, k)),
            # bias (1, tn): resident across the whole K axis.
            pl.BlockSpec((1, tn), lambda i, j, k: (0, j)),
        ],
        out_specs=pl.BlockSpec((tm, tn), lambda i, j, k: (i, j)),
        scratch_shapes=[pltpu.VMEM((tm, tn), jnp.float32)],
        compiler_params=pltpu.CompilerParams(
            dimension_semantics=("parallel", "parallel", "arbitrary"),
            vmem_limit_bytes=vmem_limit,
            allow_input_fusion=[True, True, True],
        ),
        cost_estimate=cost,
    )(xp, wp, bp)

    if (Mp, Np) != (M, N):
        out = out[:M, :N]
    return out


if __name__ == "__main__":
    # Small shapes implied by the module: batch=8, input_dim=32, output_dim=32.
    batch, input_dim, output_dim = 8, 32, 32

    key = jax.random.PRNGKey(0)
    kx, kw, kb = jax.random.split(key, 3)

    x = jax.random.normal(kx, (batch, input_dim), dtype=jnp.float32)
    weight = 0.1 * jax.random.normal(
        kw, (output_dim, input_dim), dtype=jnp.float32
    )
    bias = 0.1 * jax.random.normal(kb, (output_dim,), dtype=jnp.float32)

    # Reference (plain JAX), mirroring nn.Linear + ReLU.
    ref = jnp.maximum(x @ weight.T + bias, 0.0)

    # Exercise the actual Pallas kernel (the auto path would take the
    # small-problem XLA fast path at these shapes).
    out = linear_block(x, weight, bias, force_pallas=True)
    out = jax.block_until_ready(out)
    assert out.shape == (batch, output_dim)
    assert jnp.allclose(out, ref, atol=1e-5, rtol=1e-5)

    # Also sanity-check the small-problem fast path.
    out_fast = jax.block_until_ready(linear_block(x, weight, bias))
    assert jnp.allclose(out_fast, ref, atol=1e-5, rtol=1e-5)

    print("KERNEL_OK")
</pallas_src>

<mosaic_0001>
module attributes {stable_mosaic.version = 11 : i64} {
  func.func @_linear_block_kernel(%arg0: i32, %arg1: i32, %arg2: i32, %arg3: memref<8x128xf32, #tpu.memory_space<vmem>>, %arg4: memref<128x128xf32, #tpu.memory_space<vmem>>, %arg5: memref<1x128xf32, #tpu.memory_space<vmem>>, %arg6: memref<8x128xf32, #tpu.memory_space<vmem>>, %arg7: memref<8x128xf32, #tpu.memory_space<vmem>>) attributes {dimension_semantics = [#tpu.dimension_semantics<parallel>, #tpu.dimension_semantics<parallel>, #tpu.dimension_semantics<arbitrary>], iteration_bounds = array<i64: 1, 1, 1>, scalar_prefetch = 0 : i64, scratch_operands = 1 : i64, tpu.core_type = #tpu.core_type<tc>, window_params = [{transform_indices = @transform_0, window_bounds = array<i64: 8, 128>}, {transform_indices = @transform_1, window_bounds = array<i64: 128, 128>}, {transform_indices = @transform_2, window_bounds = array<i64: 1, 128>}, {transform_indices = @transform_3, window_bounds = array<i64: 8, 128>}]} {
    %c0 = arith.constant 0 : index
    %c0_0 = arith.constant 0 : index
    %0 = vector.load %arg3[%c0, %c0_0] : memref<8x128xf32, #tpu.memory_space<vmem>>, vector<8x128xf32>
    %c0_1 = arith.constant 0 : index
    %c0_2 = arith.constant 0 : index
    %1 = vector.load %arg4[%c0_1, %c0_2] : memref<128x128xf32, #tpu.memory_space<vmem>>, vector<128x128xf32>
    %cst = arith.constant dense<0.000000e+00> : vector<8x128xf32>
    %2 = tpu.matmul %0, %1, %cst {dimension_numbers = #tpu.dot_dimension_numbers<[1], [1], [0], [0], [0, 0, 1, 0], [], []>} : vector<8x128xf32>, vector<128x128xf32>, vector<8x128xf32> -> vector<8x128xf32>
    %c0_i32 = arith.constant 0 : i32
    %3 = arith.cmpi eq, %arg2, %c0_i32 : i32
    %4 = arith.extui %3 : i1 to i32
    %c0_i32_3 = arith.constant 0 : i32
    %5 = arith.cmpi ne, %4, %c0_i32_3 : i32
    scf.if %5 {
      %c0_8 = arith.constant 0 : index
      %c0_9 = arith.constant 0 : index
      %12 = vector.load %arg7[%c0_8, %c0_9] : memref<8x128xf32, #tpu.memory_space<vmem>>, vector<8x128xf32>
      tpu.vector_store %arg7[%c0_8, %c0_9], %2 {strides = array<i32>} : memref<8x128xf32, #tpu.memory_space<vmem>>, vector<8x128xf32>,
    } else {
    }
    %c0_i32_4 = arith.constant 0 : i32
    %6 = arith.cmpi sgt, %arg2, %c0_i32_4 : i32
    %7 = arith.extui %6 : i1 to i32
    %c0_i32_5 = arith.constant 0 : i32
    %8 = arith.cmpi ne, %7, %c0_i32_5 : i32
    scf.if %8 {
      %c0_8 = arith.constant 0 : index
      %c0_9 = arith.constant 0 : index
      %12 = vector.load %arg7[%c0_8, %c0_9] : memref<8x128xf32, #tpu.memory_space<vmem>>, vector<8x128xf32>
      %13 = arith.addf %12, %2 : vector<8x128xf32>
      %c0_10 = arith.constant 0 : index
      %c0_11 = arith.constant 0 : index
      %14 = vector.load %arg7[%c0_10, %c0_11] : memref<8x128xf32, #tpu.memory_space<vmem>>, vector<8x128xf32>
      tpu.vector_store %arg7[%c0_10, %c0_11], %13 {strides = array<i32>} : memref<8x128xf32, #tpu.memory_space<vmem>>, vector<8x128xf32>,
    } else {
    }
    %c0_i32_6 = arith.constant 0 : i32
    %9 = arith.cmpi eq, %arg2, %c0_i32_6 : i32
    %10 = arith.extui %9 : i1 to i32
    %c0_i32_7 = arith.constant 0 : i32
    %11 = arith.cmpi ne, %10, %c0_i32_7 : i32
    scf.if %11 {
      %c0_8 = arith.constant 0 : index
      %c0_9 = arith.constant 0 : index
      %12 = vector.load %arg7[%c0_8, %c0_9] : memref<8x128xf32, #tpu.memory_space<vmem>>, vector<8x128xf32>
      %c0_10 = arith.constant 0 : index
      %c0_11 = arith.constant 0 : index
      %13 = vector.load %arg5[%c0_10, %c0_11] : memref<1x128xf32, #tpu.memory_space<vmem>>, vector<1x128xf32>
      %14 = vector.broadcast %13 : vector<1x128xf32> to vector<8x128xf32>
      %15 = arith.addf %12, %14 : vector<8x128xf32>
      %cst_12 = arith.constant 0.000000e+00 : f32
      %16 = vector.broadcast %cst_12 : f32 to vector<8x128xf32>
      %17 = arith.maximumf %15, %16 : vector<8x128xf32>
      %c0_13 = arith.constant 0 : index
      %c0_14 = arith.constant 0 : index
      %18 = vector.load %arg6[%c0_13, %c0_14] : memref<8x128xf32, #tpu.memory_space<vmem>>, vector<8x128xf32>
      tpu.vector_store %arg6[%c0_13, %c0_14], %17 {strides = array<i32>} : memref<8x128xf32, #tpu.memory_space<vmem>>, vector<8x128xf32>,
    } else {
    }
    return
  }
  func.func @transform_0(%arg0: i32, %arg1: i32, %arg2: i32) -> (i32, i32) {
    %c0_i32 = arith.constant 0 : i32
    return %arg0, %arg2 : i32, i32
  }
  func.func @transform_1(%arg0: i32, %arg1: i32, %arg2: i32) -> (i32, i32) {
    %c0_i32 = arith.constant 0 : i32
    return %arg1, %arg2 : i32, i32
  }
  func.func @transform_2(%arg0: i32, %arg1: i32, %arg2: i32) -> (i32, i32) {
    %c0_i32 = arith.constant 0 : i32
    %c0_i32_0 = arith.constant 0 : i32
    return %c0_i32, %arg1 : i32, i32
  }
  func.func @transform_3(%arg0: i32, %arg1: i32, %arg2: i32) -> (i32, i32) {
    %c0_i32 = arith.constant 0 : i32
    return %arg0, %arg1 : i32, i32
  }
}

</mosaic_0001>

<llo_original>
// kernel: tpu_custom_call.1
$region0: #{tpu_custom_call.1}
  #allocation0 [shape = 'u32[]', space=smem, size = 0x4, offset = 0x4, fixed_abs, tag = 'smem constant byte address 0x4 - core index']
  #allocation1 [shape = 'u32[72,128]{1,0:T(1,128)}', space=vmem, size = 0x9000, scoped, tag = 'internal scratch']
  #allocation2 [shape = 'f32[8,128]{1,0:T(8,128)}', space=vmem, size = 0x1000, scoped, tag = 'scratch operand']
  %s0 = inlined_call_operand.hbm [shape: f32[8,128], index: 0, kind: input, shape index: {}]
  %s1 = inlined_call_operand.hbm [shape: f32[128,128], index: 1, kind: input, shape index: {}]
  %s2 = inlined_call_operand.vmem [shape: f32[1,128], index: 2, kind: input, shape index: {}]
  %s3 = inlined_call_operand.hbm [shape: f32[8,128], index: 3, kind: output, shape index: {}]
  %s4 = sld [smem:[#allocation0]]
  $region42: #{tpu_custom_call.1} parent=0
    _
  %s6 = ssub.s32 1, %s4
  %s7 = scalar_select 0, %s6, %s4
  $region1: #{tpu_custom_call.1} parent=0
    #allocation3 [shape = 'u8[4096]{0}', space=vmem, size = 0x1000, scoped, tag = 'input window, operand 0, single buffered']
    #allocation4 [shape = 's32[1]{0}', space=sflag, size = 0x4, scoped, tag = 'scoped memory for tpu_custom_call.1']
    #allocation5 [shape = 's32[1]{0}', space=sflag, size = 0x4, scoped, tag = 'scoped memory for tpu_custom_call.1']
    #allocation6 [shape = 'u8[65536]{0}', space=vmem, size = 0x10000, scoped, tag = 'input window, operand 1, single buffered']
    #allocation7 [shape = 's32[1]{0}', space=sflag, size = 0x4, scoped, tag = 'scoped memory for tpu_custom_call.1']
    #allocation8 [shape = 'u8[4096]{0}', space=vmem, size = 0x1000, scoped, tag = 'output window, operand 0, single buffered']
    %8 = vsyncpa [#allocation4], 0
    %9 = vsyncpa [#allocation7], 0
    %10 = vsyncpa [#allocation5], 0
    // Predicated region
    $region2: #{tpu_custom_call.1} parent=1 // pred_check
      _
    $region3: #{tpu_custom_call.1} parent=1 // pred_check_branch
      %12 = sbr.rel (0) target = $region5
    $region4: #{tpu_custom_call.1} parent=1 // pred_region
      %14 = vsyncadd [#allocation4], 0
      %s16 = sshll.u32 %s0, 4
      %s17 = int_to_ptr.hbm [resolvable:$true] %s16
      %s18 = sshll.u32 [#allocation3], 4
      %s19 = int_to_ptr.vmem [resolvable:$true] %s18
      %21 = dma.hbm_to_vmem [thread:$0]  %s17, 128, %s19, [#allocation4]
    $region5: #{tpu_custom_call.1} parent=1 // pred_fallthru
      _
    // Predicated region
    $region6: #{tpu_custom_call.1} parent=1 // pred_check
      _
    $region7: #{tpu_custom_call.1} parent=1 // pred_check_branch
      %23 = sbr.rel (0) target = $region9
    $region8: #{tpu_custom_call.1} parent=1 // pred_region
      %25 = vsyncadd [#allocation7], 0
      %s26 = sshll.u32 %s1, 4
      %s27 = int_to_ptr.hbm [resolvable:$true] %s26
      %s28 = sshll.u32 [#allocation6], 4
      %s29 = int_to_ptr.vmem [resolvable:$true] %s28
      %34 = dma.hbm_to_vmem [thread:$0]  %s27, 2048, %s29, [#allocation7], 128, 128, 8
    $region9: #{tpu_custom_call.1} parent=1 // pred_fallthru
      _
    // Predicated region
    $region10: #{tpu_custom_call.1} parent=1 // pred_check
      _
    $region11: #{tpu_custom_call.1} parent=1 // pred_check_branch
      %36 = sbr.rel (0) target = $region13
    $region12: #{tpu_custom_call.1} parent=1 // pred_region
      _
    $region13: #{tpu_custom_call.1} parent=1 // pred_fallthru
      _
    // Predicated region
    $region14: #{tpu_custom_call.1} parent=1 // pred_check
      _
    $region15: #{tpu_custom_call.1} parent=1 // pred_check_branch
      %38 = sbr.rel (0) target = $region17
    $region16: #{tpu_custom_call.1} parent=1 // pred_region
      %40 = dma.done [#allocation4], 128
    $region17: #{tpu_custom_call.1} parent=1 // pred_fallthru
      _
    // Predicated region
    $region18: #{tpu_custom_call.1} parent=1 // pred_check
      _
    $region19: #{tpu_custom_call.1} parent=1 // pred_check_branch
      %42 = sbr.rel (0) target = $region21
    $region20: #{tpu_custom_call.1} parent=1 // pred_region
      %44 = dma.done [#allocation7], 2048
    $region21: #{tpu_custom_call.1} parent=1 // pred_fallthru
      _
    %v45 = vld [vmem:[#allocation3] sm:$0xff]
    %v46 = vld [vmem:[#allocation6] sm:$0xff]
    %v47 = vld [vmem:[#allocation6 + $0x8] sm:$0xff]
    %v48 = vld [vmem:[#allocation6 + $0x10] sm:$0xff]
    %v49 = vld [vmem:[#allocation6 + $0x18] sm:$0xff]
    %v50 = vld [vmem:[#allocation6 + $0x20] sm:$0xff]
    %v51 = vld [vmem:[#allocation6 + $0x28] sm:$0xff]
    %v52 = vld [vmem:[#allocation6 + $0x30] sm:$0xff]
    %v53 = vld [vmem:[#allocation6 + $0x38] sm:$0xff]
    %v54 = vld [vmem:[#allocation6 + $0x40] sm:$0xff]
    %v55 = vld [vmem:[#allocation6 + $0x48] sm:$0xff]
    %v56 = vld [vmem:[#allocation6 + $0x50] sm:$0xff]
    %v57 = vld [vmem:[#allocation6 + $0x58] sm:$0xff]
    %v58 = vld [vmem:[#allocation6 + $0x60] sm:$0xff]
    %v59 = vld [vmem:[#allocation6 + $0x68] sm:$0xff]
    %v60 = vld [vmem:[#allocation6 + $0x70] sm:$0xff]
    %v61 = vld [vmem:[#allocation6 + $0x78] sm:$0xff]
    %62 = vmatpush.xpose.msra.mxu0 %v61
    %63 = vmatpush.xpose.msra.mxu0 %v60
    %64 = vmatpush.xpose.msra.mxu0 %v59
    %65 = vmatpush.xpose.msra.mxu0 %v58
    %66 = vmatpush.xpose.msra.mxu0 %v57
    %67 = vmatpush.xpose.msra.mxu0 %v56
    %68 = vmatpush.xpose.msra.mxu0 %v55
    %69 = vmatpush.xpose.msra.mxu0 %v54
    %70 = vmatpush.xpose.msra.mxu0 %v53
    %71 = vmatpush.xpose.msra.mxu0 %v52
    %72 = vmatpush.xpose.msra.mxu0 %v51
    %73 = vmatpush.xpose.msra.mxu0 %v50
    %74 = vmatpush.xpose.msra.mxu0 %v49
    %75 = vmatpush.xpose.msra.mxu0 %v48
    %76 = vmatpush.xpose.msra.mxu0 %v47
    %77 = vmatpush.xpose.msra.mxu0 %v46
    %78 = vmatmul.f32.gmra.mxu0 %v45
    %v79 = vpop.f32.mrf.mxu0
    %v80 = vadd.f32 0.0, %v79
    %81 = vdwg.mxu0
    %p82 = scmp.eq.s32.totalorder 0, 0
    // Predicated region
    $region22: #{tpu_custom_call.1} parent=1 // pred_check
      %p83 = pneg %p82
    $region23: #{tpu_custom_call.1} parent=1 // pred_check_branch
      %85 = sbr.rel (%p83) target = $region25
    $region24: #{tpu_custom_call.1} parent=1 // pred_region
      %86 = vst [vmem:[#allocation2] sm:$0xff] %v80
    $region25: #{tpu_custom_call.1} parent=1 // pred_fallthru
      _
    %p87 = scmp.gt.s32.totalorder 0, 0
    // Predicated region
    $region26: #{tpu_custom_call.1} parent=1 // pred_check
      %p88 = pneg %p87
    $region27: #{tpu_custom_call.1} parent=1 // pred_check_branch
      %90 = sbr.rel (%p88) target = $region29
    $region28: #{tpu_custom_call.1} parent=1 // pred_region
      %v91 = vld [vmem:[#allocation2] sm:$0xff]
      %v92 = vadd.f32 %v91, %v80
      %93 = vst [vmem:[#allocation2] sm:$0xff] %v92
    $region29: #{tpu_custom_call.1} parent=1 // pred_fallthru
      _
    // Predicated region
    $region30: #{tpu_custom_call.1} parent=1 // pred_check
      %p94 = pneg %p82
    $region31: #{tpu_custom_call.1} parent=1 // pred_check_branch
      %96 = sbr.rel (%p94) target = $region33
    $region32: #{tpu_custom_call.1} parent=1 // pred_region
      %v97 = vld [vmem:[#allocation2] sm:$0xff]
      %v98 = vld [vmem:[%s2] sm:$0x1]
      %v100 = vperm.slane %v98, 0
      %v102 = vadd.f32 %v97, %v100
      %v103 = vmax.f32 %v102, 0.0
      %104 = vst [vmem:[#allocation8] sm:$0xff] %v103
    $region33: #{tpu_custom_call.1} parent=1 // pred_fallthru
      _
    // Predicated region
    $region34: #{tpu_custom_call.1} parent=1 // pred_check
      _
    $region35: #{tpu_custom_call.1} parent=1 // pred_check_branch
      %106 = sbr.rel (0) target = $region37
    $region36: #{tpu_custom_call.1} parent=1 // pred_region
      %108 = vsyncadd [#allocation5], 0
      %s110 = sshll.u32 [#allocation8], 4
      %s111 = int_to_ptr.vmem [resolvable:$true] %s110
      %s112 = sshll.u32 %s3, 4
      %s113 = int_to_ptr.hbm [resolvable:$true] %s112
      %115 = dma.vmem_to_hbm [thread:$0]  %s111, 128, %s113, [#allocation5]
    $region37: #{tpu_custom_call.1} parent=1 // pred_fallthru
      _
    // Predicated region
    $region38: #{tpu_custom_call.1} parent=1 // pred_check
      _
    $region39: #{tpu_custom_call.1} parent=1 // pred_check_branch
      %117 = sbr.rel (0) target = $region41
    $region40: #{tpu_custom_call.1} parent=1 // pred_region
      %119 = dma.done [#allocation5], 128
    $region41: #{tpu_custom_call.1} parent=1 // pred_fallthru
      _
    %120 = vsyncpa [#allocation4], 1
    %121 = vsyncpa [#allocation7], 1
    %122 = vsyncpa [#allocation5], 1

</llo_original>
